<compile_context>
chip_gen: v6e
topology: v6e:2x2x1
jax: 0.10.0
libtpu: 0.0.40
codegen_flags: <defaults>
</compile_context>

<pallas_src>
import numpy as np
import jax
import jax.numpy as jnp
from jax.experimental import pallas as pl
from jax.experimental.pallas import tpu as pltpu


def _round_up(v, m):
    return -(-v // m) * m


def _pick_spatial_tile(hw, k4, c4, cap=512):
    """Tile rows per grid step: multiple of 16, VMEM-bounded, <= cap."""
    # per-row VMEM: double-buffered bf16 x/y blocks + f32 matmul accumulator
    per_row = 2 * (k4 * 2) + 2 * (c4 * 2) + c4 * 4
    while cap > 16 and cap * per_row > 12 * (1 << 20):
        cap //= 2
    return min(cap, _round_up(hw, 16))


def _convt_poly_kernel(x_ref, w_ref, y_ref, sum_ref, ssq_ref):
    """One spatial tile: polyphase ConvTranspose2d matmul + per-tile BN partial sums.

    x_ref : (1, T, 4*Cin)       bf16  [x(a,b) | x(a,b+1) | x(a+1,b) | x(a+1,b+1)]
    w_ref : (4*Cin, 4*Cout_p)   bf16  phase-major column blocks
    y_ref : (1, T, 4*Cout_p)    bf16  phase-packed conv output
    sum_ref, ssq_ref : (1, 1, 1, 4*Cout_p) f32 per-tile partial sums (reduced in XLA)
    """
    y = jnp.dot(x_ref[0], w_ref[...], preferred_element_type=jnp.float32)
    y_ref[0] = y.astype(y_ref.dtype)
    sum_ref[...] = jnp.sum(y, axis=0).reshape(sum_ref.shape)
    ssq_ref[...] = jnp.sum(y * y, axis=0).reshape(ssq_ref.shape)


def up_conv_forward(x_nchw, w_pt, b, gamma, beta, eps=1e-5):
    """up_conv forward: (N, Cin, H, W) -> (N, Cout, 2H, 2W), training-mode BN."""
    # NOTE: ConvTranspose2d bias `b` cancels exactly under training-mode BatchNorm,
    # so it is intentionally not used in the compute path.
    # TODO(synk): BatchNorm running_mean/running_var momentum updates (stateful
    # side-effect of nn.BatchNorm2d in train mode) are not modeled.
    N, Cin, H, W = x_nchw.shape
    Cout = w_pt.shape[1]
    Ho, Wo = 2 * H, 2 * W
    HW = H * W
    Cout_p = _round_up(Cout, 64)          # 4*Cout_p is a multiple of 256 (lane-dense MXU N dim)
    C4 = 4 * Cout_p
    K4 = 4 * Cin                          # contraction dim (not zero-padded on purpose)
    T = _pick_spatial_tile(HW, K4, C4)
    HW_pad = _round_up(HW, T)
    nT = HW_pad // T

    # ---- glue (bf16 throughout): NCHW -> NHWC, 4 shifted taps of the un-dilated input ----
    x = jnp.transpose(x_nchw, (0, 2, 3, 1)).astype(jnp.bfloat16)       # (N, H, W, Cin)
    xz = jnp.pad(x, ((0, 0), (0, 1), (0, 1), (0, 0)))                  # zero row/col bottom/right
    xcat = jnp.concatenate(
        [xz[:, :H, :W, :],             # x[a,   b  ]
         xz[:, :H, 1:W + 1, :],        # x[a,   b+1]
         xz[:, 1:H + 1, :W, :],        # x[a+1, b  ]
         xz[:, 1:H + 1, 1:W + 1, :]],  # x[a+1, b+1]
        axis=-1).reshape(N, HW, K4)
    if HW_pad > HW:                      # pad rows -> zero conv output, zero BN contribution
        xcat = jnp.pad(xcat, ((0, 0), (0, HW_pad - HW), (0, 0)))

    # ---- glue: polyphase weight matrix (4*Cin, 4*Cout_p) ----
    # Output phase p = 2*ph + pw sits at output pixel (2a+ph, 2b+pw).
    #   y[2a,2b]     = x00@W[1,1]
    #   y[2a,2b+1]   = x00@W[1,2] + x01@W[1,0]
    #   y[2a+1,2b]   = x00@W[2,1] + x10@W[0,1]
    #   y[2a+1,2b+1] = x00@W[2,2] + x01@W[2,0] + x10@W[0,2] + x11@W[0,0]
    wf = w_pt.astype(jnp.float32)                                     # (Cin, Cout, 3, 3)
    Z = jnp.zeros((Cin, Cout_p), jnp.float32)
    pc = lambda kh, kw: jnp.pad(wf[:, :, kh, kw], ((0, 0), (0, Cout_p - Cout)))
    blocks = [[Z, Z, Z, Z] for _ in range(4)]                         # blocks[tap][phase]
    blocks[0][0] = pc(1, 1)
    blocks[0][1] = pc(1, 2); blocks[1][1] = pc(1, 0)
    blocks[0][2] = pc(2, 1); blocks[2][2] = pc(0, 1)
    blocks[0][3] = pc(2, 2); blocks[1][3] = pc(2, 0)
    blocks[2][3] = pc(0, 2); blocks[3][3] = pc(0, 0)
    w_mat = jnp.concatenate(
        [jnp.concatenate(row, axis=1) for row in blocks], axis=0).astype(jnp.bfloat16)

    # ---- VMEM budget (explicit: v5e default scoped limit is only 16 MiB) ----
    blk_bytes = (2 * T * K4 * 2        # x block, double-buffered, bf16
                 + 2 * K4 * C4 * 2     # weight block, double-buffered, bf16
                 + 2 * T * C4 * 2      # y block, double-buffered, bf16
                 + 4 * C4 * 4          # sum/ssq blocks
                 + T * C4 * 4)         # f32 matmul accumulator
    vmem_limit = int(min(64 * (1 << 20), max(2 * blk_bytes, 16 * (1 << 20))))

    # ---- kernel: tiled polyphase matmul + per-tile BN partial stats ----
    y, psum, pssq = pl.pallas_call(
        _convt_poly_kernel,
        out_shape=(
            jax.ShapeDtypeStruct((N, HW_pad, C4), jnp.bfloat16),
            jax.ShapeDtypeStruct((N, nT, 1, C4), jnp.float32),
            jax.ShapeDtypeStruct((N, nT, 1, C4), jnp.float32),
        ),
        grid=(N, nT),
        in_specs=[
            pl.BlockSpec((1, T, K4), lambda n, t: (n, t, 0)),
            pl.BlockSpec((K4, C4), lambda n, t: (0, 0)),
        ],
        out_specs=(
            pl.BlockSpec((1, T, C4), lambda n, t: (n, t, 0)),
            pl.BlockSpec((1, 1, 1, C4), lambda n, t: (n, t, 0, 0)),
            pl.BlockSpec((1, 1, 1, C4), lambda n, t: (n, t, 0, 0)),
        ),
        compiler_params=pltpu.CompilerParams(
            dimension_semantics=("parallel", "parallel"),
            vmem_limit_bytes=vmem_limit),
        cost_estimate=pl.CostEstimate(
            flops=2 * N * HW_pad * K4 * C4,
            transcendentals=0,
            bytes_accessed=(N * HW_pad * K4 * 2 + K4 * C4 * 2
                            + N * HW_pad * C4 * 2 + 2 * N * nT * C4 * 4)),
    )(xcat, w_mat)

    # ---- BN batch stats (training mode, biased variance) -> folded scale/shift ----
    count = float(N * Ho * Wo)
    csum = psum.reshape(N * nT, 4, Cout_p).sum(axis=(0, 1))[:Cout]
    cssq = pssq.reshape(N * nT, 4, Cout_p).sum(axis=(0, 1))[:Cout]
    mean = csum / count
    var = jnp.maximum(cssq / count - mean * mean, 0.0)
    scale = gamma.astype(jnp.float32) / jnp.sqrt(var + eps)
    shift = beta.astype(jnp.float32) - mean * scale

    # ---- epilogue: de-interleave phases + NCHW + BN scale/shift + ReLU ----
    # Pure elementwise + copy: XLA fuses this into a single pass over the tensor
    # (bf16 read, f32 write), replacing the former separate BN/ReLU kernel.
    y6 = y[:, :HW, :].reshape(N, H, W, 2, 2, Cout_p)[..., :Cout].astype(jnp.float32)
    out = jnp.transpose(y6, (0, 5, 1, 3, 2, 4)).reshape(N, Cout, Ho, Wo)
    out = jnp.maximum(out * scale[None, :, None, None] + shift[None, :, None, None], 0.0)
    return out


def _reference_numpy(x, w, b, gamma, beta, eps=1e-5):
    """Direct (scatter-form) ConvTranspose2d + train-mode BN + ReLU in numpy."""
    N, Cin, H, W = x.shape
    Cout = w.shape[1]
    Ho, Wo = 2 * H, 2 * W
    y = np.zeros((N, Cout, Ho, Wo), np.float64)
    for ih in range(H):
        for iw in range(W):
            for kh in range(3):
                for kw in range(3):
                    oh = ih * 2 - 1 + kh
                    ow = iw * 2 - 1 + kw
                    if 0 <= oh < Ho and 0 <= ow < Wo:
                        y[:, :, oh, ow] += x[:, :, ih, iw] @ w[:, :, kh, kw]
    y += b[None, :, None, None]
    mean = y.mean(axis=(0, 2, 3), keepdims=True)
    var = y.var(axis=(0, 2, 3), keepdims=True)   # biased, as in BN forward
    out = gamma[None, :, None, None] * (y - mean) / np.sqrt(var + eps) \
        + beta[None, :, None, None]
    return np.maximum(out, 0.0).astype(np.float32)


if __name__ == "__main__":
    key = jax.random.PRNGKey(0)
    k1, k2, k3, k4, k5 = jax.random.split(key, 5)
    N, Cin, Cout, H, W = 2, 4, 8, 16, 16

    x = jax.random.normal(k1, (N, Cin, H, W), jnp.float32)
    w_pt = 0.2 * jax.random.normal(k2, (Cin, Cout, 3, 3), jnp.float32)   # ConvTranspose2d weight
    b = 0.1 * jax.random.normal(k3, (Cout,), jnp.float32)                # ConvTranspose2d bias
    gamma = 1.0 + 0.1 * jax.random.normal(k4, (Cout,), jnp.float32)      # BN weight
    beta = 0.1 * jax.random.normal(k5, (Cout,), jnp.float32)             # BN bias

    out = jax.jit(up_conv_forward)(x, w_pt, b, gamma, beta)
    out = jax.block_until_ready(out)
    assert out.shape == (N, Cout, 2 * H, 2 * W)

    # Reference on bf16-rounded inputs (the kernel feeds the MXU bf16), f64 math.
    xb = np.asarray(x.astype(jnp.bfloat16).astype(jnp.float32), np.float64)
    wb = np.asarray(w_pt.astype(jnp.bfloat16).astype(jnp.float32), np.float64)
    ref = _reference_numpy(xb, wb, np.asarray(b, np.float64),
                           np.asarray(gamma, np.float64), np.asarray(beta, np.float64))
    np.testing.assert_allclose(np.asarray(out), ref, rtol=2e-2, atol=2e-2)
    print("KERNEL_OK")
</pallas_src>

<mosaic_0001>
module attributes {stable_mosaic.version = 11 : i64} {
  func.func @_convt_poly_kernel(%arg0: i32, %arg1: i32, %arg2: memref<1x256x16xbf16, #tpu.memory_space<vmem>>, %arg3: memref<16x256xbf16, #tpu.memory_space<vmem>>, %arg4: memref<1x256x256xbf16, #tpu.memory_space<vmem>>, %arg5: memref<1x1x1x256xf32, #tpu.memory_space<vmem>>, %arg6: memref<1x1x1x256xf32, #tpu.memory_space<vmem>>) attributes {dimension_semantics = [#tpu.dimension_semantics<parallel>, #tpu.dimension_semantics<parallel>], iteration_bounds = array<i64: 2, 1>, scalar_prefetch = 0 : i64, scratch_operands = 0 : i64, tpu.core_type = #tpu.core_type<tc>, window_params = [{transform_indices = @transform_0, window_bounds = array<i64: 1, 256, 16>}, {pipeline_mode = #tpu.pipeline_mode<synchronous>, transform_indices = @transform_1, window_bounds = array<i64: 16, 256>}, {transform_indices = @transform_2, window_bounds = array<i64: 1, 256, 256>}, {transform_indices = @transform_3, window_bounds = array<i64: 1, 1, 1, 256>}, {transform_indices = @transform_4, window_bounds = array<i64: 1, 1, 1, 256>}]} {
    %c0 = arith.constant 0 : index
    %c0_0 = arith.constant 0 : index
    %c0_1 = arith.constant 0 : index
    %0 = vector.load %arg2[%c0, %c0_0, %c0_1] : memref<1x256x16xbf16, #tpu.memory_space<vmem>>, vector<1x256x16xbf16>
    %1 = vector.shape_cast %0 : vector<1x256x16xbf16> to vector<256x16xbf16>
    %c0_2 = arith.constant 0 : index
    %c0_3 = arith.constant 0 : index
    %2 = vector.load %arg3[%c0_2, %c0_3] : memref<16x256xbf16, #tpu.memory_space<vmem>>, vector<16x256xbf16>
    %cst = arith.constant dense<0.000000e+00> : vector<256x256xf32>
    %3 = tpu.matmul %1, %2, %cst {dimension_numbers = #tpu.dot_dimension_numbers<[1], [0], [0], [1], [0, 0, 1, 1], [], []>} : vector<256x16xbf16>, vector<16x256xbf16>, vector<256x256xf32> -> vector<256x256xf32>
    %4 = arith.truncf %3 : vector<256x256xf32> to vector<256x256xbf16>
    %c0_4 = arith.constant 0 : index
    %c0_5 = arith.constant 0 : index
    %c0_6 = arith.constant 0 : index
    %5 = vector.load %arg4[%c0_4, %c0_5, %c0_6] : memref<1x256x256xbf16, #tpu.memory_space<vmem>>, vector<1x256x256xbf16>
    %6 = vector.shape_cast %5 : vector<1x256x256xbf16> to vector<256x256xbf16>
    %7 = vector.shape_cast %4 : vector<256x256xbf16> to vector<1x256x256xbf16>
    tpu.vector_store %arg4[%c0_4, %c0_5, %c0_6], %7 {strides = array<i32>} : memref<1x256x256xbf16, #tpu.memory_space<vmem>>, vector<1x256x256xbf16>,
    %cst_7 = arith.constant dense<0.000000e+00> : vector<256xf32>
    %8 = vector.multi_reduction <add>, %3, %cst_7 [0] : vector<256x256xf32> to vector<256xf32>
    %9 = vector.shape_cast %8 : vector<256xf32> to vector<1x1x1x256xf32>
    %c0_8 = arith.constant 0 : index
    %c0_9 = arith.constant 0 : index
    %c0_10 = arith.constant 0 : index
    %c0_11 = arith.constant 0 : index
    %10 = vector.load %arg5[%c0_8, %c0_9, %c0_10, %c0_11] : memref<1x1x1x256xf32, #tpu.memory_space<vmem>>, vector<1x1x1x256xf32>
    tpu.vector_store %arg5[%c0_8, %c0_9, %c0_10, %c0_11], %9 {strides = array<i32>} : memref<1x1x1x256xf32, #tpu.memory_space<vmem>>, vector<1x1x1x256xf32>,
    %11 = arith.mulf %3, %3 : vector<256x256xf32>
    %cst_12 = arith.constant dense<0.000000e+00> : vector<256xf32>
    %12 = vector.multi_reduction <add>, %11, %cst_12 [0] : vector<256x256xf32> to vector<256xf32>
    %13 = vector.shape_cast %12 : vector<256xf32> to vector<1x1x1x256xf32>
    %c0_13 = arith.constant 0 : index
    %c0_14 = arith.constant 0 : index
    %c0_15 = arith.constant 0 : index
    %c0_16 = arith.constant 0 : index
    %14 = vector.load %arg6[%c0_13, %c0_14, %c0_15, %c0_16] : memref<1x1x1x256xf32, #tpu.memory_space<vmem>>, vector<1x1x1x256xf32>
    tpu.vector_store %arg6[%c0_13, %c0_14, %c0_15, %c0_16], %13 {strides = array<i32>} : memref<1x1x1x256xf32, #tpu.memory_space<vmem>>, vector<1x1x1x256xf32>,
    return
  }
  func.func @transform_0(%arg0: i32, %arg1: i32) -> (i32, i32, i32) {
    %c0_i32 = arith.constant 0 : i32
    %c0_i32_0 = arith.constant 0 : i32
    return %arg0, %arg1, %c0_i32 : i32, i32, i32
  }
  func.func @transform_1(%arg0: i32, %arg1: i32) -> (i32, i32) {
    %c0_i32 = arith.constant 0 : i32
    %c0_i32_0 = arith.constant 0 : i32
    %c0_i32_1 = arith.constant 0 : i32
    return %c0_i32, %c0_i32_0 : i32, i32
  }
  func.func @transform_2(%arg0: i32, %arg1: i32) -> (i32, i32, i32) {
    %c0_i32 = arith.constant 0 : i32
    %c0_i32_0 = arith.constant 0 : i32
    return %arg0, %arg1, %c0_i32 : i32, i32, i32
  }
  func.func @transform_3(%arg0: i32, %arg1: i32) -> (i32, i32, i32, i32) {
    %c0_i32 = arith.constant 0 : i32
    %c0_i32_0 = arith.constant 0 : i32
    %c0_i32_1 = arith.constant 0 : i32
    return %arg0, %arg1, %c0_i32, %c0_i32_0 : i32, i32, i32, i32
  }
  func.func @transform_4(%arg0: i32, %arg1: i32) -> (i32, i32, i32, i32) {
    %c0_i32 = arith.constant 0 : i32
    %c0_i32_0 = arith.constant 0 : i32
    %c0_i32_1 = arith.constant 0 : i32
    return %arg0, %arg1, %c0_i32, %c0_i32_0 : i32, i32, i32, i32
  }
}

</mosaic_0001>

<llo_original>
// kernel: up_conv_forward.1
$region0: #{up_conv_forward.1}
  #allocation0 [shape = 'u32[]', space=smem, size = 0x4, offset = 0x4, fixed_abs, tag = 'smem constant byte address 0x4 - core index']
  #allocation1 [shape = 'u32[144,128]{1,0:T(1,128)}', space=vmem, size = 0x12000, scoped, tag = 'internal scratch']
  %s0 = inlined_call_operand.vmem [shape: bf16[2,256,16], index: 0, kind: input, shape index: {}]
  %s1 = inlined_call_operand.vmem [shape: bf16[16,256], index: 1, kind: input, shape index: {}]
  %s2 = inlined_call_operand.vmem [shape: bf16[2,256,256], index: 2, kind: output, shape index: {0}]
  %s3 = inlined_call_operand.vmem [shape: f32[2,1,1,256], index: 3, kind: output, shape index: {1}]
  %s4 = inlined_call_operand.vmem [shape: f32[2,1,1,256], index: 4, kind: output, shape index: {2}]
  %5 = xla_tuple %s2, %s3, %s4
  %s6 = sld [smem:[#allocation0]]
  $region57: #{up_conv_forward.1} parent=0
    _
  %s8 = ssub.s32 1, %s6
  %s9 = scalar_select 0, %s8, %s6
  loop: start=0, step=1, limit=4
  $region2: #{up_conv_forward.1} parent=0 // loop_pre_header
    _
  $region3: #{up_conv_forward.1} parent=0 // loop_header
    %s11 = sphi 0, %s15
    %p12 = scmp.ge.s32.totalorder %s11, 4
    %s18 = sphi 0, %s30
    %s19 = sphi 0, %s26
    %s20 = sphi 0, %s18
    %s21 = sphi 0, %s19
    %s22 = sphi 0, %s20
    %s23 = sphi 0, %s21
    %s35 = sphi 0, %s37
    %s38 = sphi 0, %s35
    %s39 = sphi 0, %s38
    %s55 = sphi 0, %s39
    %s59 = sphi 0, %s59
    %s61 = sphi 0, %s59
    %s62 = sphi 0, %s61
    %s76 = sphi 0, %s62
    %s84 = sphi 0, %s86
    %s87 = sphi 0, %s84
    %s88 = sphi 0, %s87
    %s104 = sphi 0, %s88
    %s112 = sphi 0, %s114
    %s115 = sphi 0, %s112
    %s116 = sphi 0, %s115
    %s132 = sphi 0, %s116
    %s140 = sphi 0, %s142
    %s143 = sphi 0, %s140
    %s144 = sphi 0, %s143
    %s160 = sphi 0, %s144
  $region4: #{up_conv_forward.1} parent=0 // loop_header_branch
    %14 = sbr.rel (%p12) target = $region8
  $region5: #{up_conv_forward.1} parent=0 // loop_body
    %s16 = ssub.s32 %s11, 1
    %s17 = ssub.s32 %s11, 2
    %s24 = sadd.s32 1, %s19
    %p25 = scmp.ge.s32.totalorder %s24, 1
    %s26 = scalar_select %p25, 0, %s24
    %s27 = sadd.s32 1, %s18
    %s28 = scalar_select %p25, %s27, %s18
    %p29 = scmp.ge.s32.totalorder %s28, 2
    %s30 = scalar_select %p29, 0, %s28
    %s31 = ssub.s32 %s18, %s30
    %s32 = ssub.s32 %s19, %s26
    %s33 = sor.u32 %s31, %s32
    %p34 = scmp.eq.s32.totalorder %s33, 0
    %s36 = sadd.s32 %s35, 1
    %s37 = scalar_select %p34, %s35, %s36
    %p40 = pneg %p34
    %p41 = scmp.eq.s32.totalorder %s11, 1
    %p42 = por %p40, %p41
    %p43 = scmp.ne.s32.totalorder %s35, %s38
    %p44 = scmp.eq.s32.totalorder %s11, 0
    %p45 = por %p43, %p44
    %p46 = scmp.ne.s32.totalorder %s35, %s38
    %p47 = scmp.eq.s32.totalorder %s16, 1
    %p48 = por %p46, %p47
    %p49 = scmp.ne.s32.totalorder %s38, %s39
    %p50 = scmp.eq.s32.totalorder %s16, 0
    %p51 = por %p49, %p50
    %p52 = scmp.ne.s32.totalorder %s38, %s39
    %p53 = scmp.eq.s32.totalorder %s17, 1
    %p54 = por %p52, %p53
    %p56 = scmp.ne.s32.totalorder %s39, %s55
    %p57 = scmp.eq.s32.totalorder %s17, 0
    %p58 = por %p56, %p57
    %s60 = sadd.s32 %s59, 1
    %p63 = scmp.eq.s32.totalorder %s11, 1
    %p64 = scmp.ne.s32.totalorder %s59, %s61
    %p65 = scmp.eq.s32.totalorder %s11, 0
    %p66 = por %p64, %p65
    %p67 = scmp.ne.s32.totalorder %s59, %s61
    %p68 = scmp.eq.s32.totalorder %s16, 1
    %p69 = por %p67, %p68
    %p70 = scmp.ne.s32.totalorder %s61, %s62
    %p71 = scmp.eq.s32.totalorder %s16, 0
    %p72 = por %p70, %p71
    %p73 = scmp.ne.s32.totalorder %s61, %s62
    %p74 = scmp.eq.s32.totalorder %s17, 1
    %p75 = por %p73, %p74
    %p77 = scmp.ne.s32.totalorder %s62, %s76
    %p78 = scmp.eq.s32.totalorder %s17, 0
    %p79 = por %p77, %p78
    %s80 = ssub.s32 %s18, %s30
    %s81 = ssub.s32 %s19, %s26
    %s82 = sor.u32 %s80, %s81
    %p83 = scmp.eq.s32.totalorder %s82, 0
    %s85 = sadd.s32 %s84, 1
    %s86 = scalar_select %p83, %s84, %s85
    %p89 = pneg %p83
    %p90 = scmp.eq.s32.totalorder %s11, 1
    %p91 = por %p89, %p90
    %p92 = scmp.ne.s32.totalorder %s84, %s87
    %p93 = scmp.eq.s32.totalorder %s11, 0
    %p94 = por %p92, %p93
    %p95 = scmp.ne.s32.totalorder %s84, %s87
    %p96 = scmp.eq.s32.totalorder %s16, 1
    %p97 = por %p95, %p96
    %p98 = scmp.ne.s32.totalorder %s87, %s88
    %p99 = scmp.eq.s32.totalorder %s16, 0
    %p100 = por %p98, %p99
    %p101 = scmp.ne.s32.totalorder %s87, %s88
    %p102 = scmp.eq.s32.totalorder %s17, 1
    %p103 = por %p101, %p102
    %p105 = scmp.ne.s32.totalorder %s88, %s104
    %p106 = scmp.eq.s32.totalorder %s17, 0
    %p107 = por %p105, %p106
    %s108 = ssub.s32 %s18, %s30
    %s109 = ssub.s32 %s19, %s26
    %s110 = sor.u32 %s108, %s109
    %p111 = scmp.eq.s32.totalorder %s110, 0
    %s113 = sadd.s32 %s112, 1
    %s114 = scalar_select %p111, %s112, %s113
    %p117 = pneg %p111
    %p118 = scmp.eq.s32.totalorder %s11, 1
    %p119 = por %p117, %p118
    %p120 = scmp.ne.s32.totalorder %s112, %s115
    %p121 = scmp.eq.s32.totalorder %s11, 0
    %p122 = por %p120, %p121
    %p123 = scmp.ne.s32.totalorder %s112, %s115
    %p124 = scmp.eq.s32.totalorder %s16, 1
    %p125 = por %p123, %p124
    %p126 = scmp.ne.s32.totalorder %s115, %s116
    %p127 = scmp.eq.s32.totalorder %s16, 0
    %p128 = por %p126, %p127
    %p129 = scmp.ne.s32.totalorder %s115, %s116
    %p130 = scmp.eq.s32.totalorder %s17, 1
    %p131 = por %p129, %p130
    %p133 = scmp.ne.s32.totalorder %s116, %s132
    %p134 = scmp.eq.s32.totalorder %s17, 0
    %p135 = por %p133, %p134
    %s136 = ssub.s32 %s18, %s30
    %s137 = ssub.s32 %s19, %s26
    %s138 = sor.u32 %s136, %s137
    %p139 = scmp.eq.s32.totalorder %s138, 0
    %s141 = sadd.s32 %s140, 1
    %s142 = scalar_select %p139, %s140, %s141
    %p145 = pneg %p139
    %p146 = scmp.eq.s32.totalorder %s11, 1
    %p147 = por %p145, %p146
    %p148 = scmp.ne.s32.totalorder %s140, %s143
    %p149 = scmp.eq.s32.totalorder %s11, 0
    %p150 = por %p148, %p149
    %p151 = scmp.ne.s32.totalorder %s140, %s143
    %p152 = scmp.eq.s32.totalorder %s16, 1
    %p153 = por %p151, %p152
    %p154 = scmp.ne.s32.totalorder %s143, %s144
    %p155 = scmp.eq.s32.totalorder %s16, 0
    %p156 = por %p154, %p155
    %p157 = scmp.ne.s32.totalorder %s143, %s144
    %p158 = scmp.eq.s32.totalorder %s17, 1
    %p159 = por %p157, %p158
    %p161 = scmp.ne.s32.totalorder %s144, %s160
    %p162 = scmp.eq.s32.totalorder %s17, 0
    %p163 = por %p161, %p162
    %p164 = scmp.le.s32.totalorder 1, %s11
    %p165 = scmp.lt.s32.totalorder %s11, 3
    %p166 = pnand %p164, %p165
    %p167 = pneg %p166
    // Predicated region
    $region9: #{up_conv_forward.1} parent=5 // pred_check
      _
    $region10: #{up_conv_forward.1} parent=5 // pred_check_branch
      %169 = sbr.rel (%p166) target = $region12
    $region11: #{up_conv_forward.1} parent=5 // pred_region
      %s170 = ssub.s32 %s11, 1
      // Predicated region
      $region13: #{up_conv_forward.1} parent=11 // pred_check
        %p171 = pneg %p72
      $region14: #{up_conv_forward.1} parent=11 // pred_check_branch
        %173 = sbr.rel (%p171) target = $region16
      $region15: #{up_conv_forward.1} parent=11 // pred_region
        _
      $region16: #{up_conv_forward.1} parent=11 // pred_fallthru
        _
    $region12: #{up_conv_forward.1} parent=5 // pred_fallthru
      _
    %p174 = scmp.lt.s32.totalorder %s11, 2
    // Predicated region
    $region17: #{up_conv_forward.1} parent=5 // pred_check
      %p175 = pneg %p174
    $region18: #{up_conv_forward.1} parent=5 // pred_check_branch
      %177 = sbr.rel (%p175) target = $region20
    $region19: #{up_conv_forward.1} parent=5 // pred_region
      // Predicated region
      $region21: #{up_conv_forward.1} parent=19 // pred_check
        %p178 = pneg %p45
      $region22: #{up_conv_forward.1} parent=19 // pred_check_branch
        %180 = sbr.rel (%p178) target = $region24
      $region23: #{up_conv_forward.1} parent=19 // pred_region
        %s181 = smul.u32 32, %s19
        %p182 = scmp.lt.s32.totalorder %s18, 1
        %s183 = scalar_select %p182, %s18, 1
        %p184 = scmp.lt.s32.totalorder %s181, 31
        %s185 = scalar_select %p184, %s181, 31
        %s186 = smul.addr %s183, 32
        %s187 = sadd.s32 %s185, %s186
        %s188 = smul.addr %s187, 4
        %s189 = scalar_lea.vmem %s0, %s188
        %s190 = smul.u32 32, %s19
      $region24: #{up_conv_forward.1} parent=19 // pred_fallthru
        _
    $region20: #{up_conv_forward.1} parent=5 // pred_fallthru
      _
    %p191 = scmp.le.s32.totalorder 1, %s11
    %p192 = scmp.lt.s32.totalorder %s11, 3
    %p193 = pnand %p191, %p192
    %p194 = pneg %p193
    // Predicated region
    $region25: #{up_conv_forward.1} parent=5 // pred_check
      _
    $region26: #{up_conv_forward.1} parent=5 // pred_check_branch
      %196 = sbr.rel (%p193) target = $region28
    $region27: #{up_conv_forward.1} parent=5 // pred_region
      %s197 = ssub.s32 %s11, 1
      %s198 = smul.u32 32, %s21
      %p199 = scmp.lt.s32.totalorder %s20, 1
      %s200 = scalar_select %p199, %s20, 1
      %p201 = scmp.lt.s32.totalorder %s198, 31
      %s202 = scalar_select %p201, %s198, 31
      %s203 = smul.addr %s200, 32
      %s204 = sadd.s32 %s202, %s203
      %s205 = smul.addr %s204, 4
      %s206 = scalar_lea.vmem %s0, %s205
      %p207 = pneg %p51
      %p208 = pneg %p48
      %p209 = pneg %p72
      %p210 = pneg %p69
      %p211 = pneg %p100
      %p212 = pneg %p97
      %s213 = smul.u32 32, %s21
      %p214 = scmp.lt.s32.totalorder %s20, 1
      %s215 = scalar_select %p214, %s20, 1
      %p216 = scmp.lt.s32.totalorder %s213, 31
      %s217 = scalar_select %p216, %s213, 31
      %s218 = smul.addr %s217, 2
      %s219 = smul.addr %s215, 64
      %s220 = sadd.s32 %s218, %s219
      %s221 = smul.addr %s220, 4
      %s222 = scalar_lea.vmem %s2, %s221
      %p223 = pneg %p128
      %p224 = pneg %p125
      %p225 = scmp.lt.s32.totalorder %s20, 1
      %s226 = scalar_select %p225, %s20, 1
      %p227 = scmp.lt.s32.totalorder %s21, 0
      %s228 = scalar_select %p227, %s21, 0
      %s229 = smul.addr %s228, 2
      %s230 = smul.addr %s226, 2
      %s231 = sadd.s32 %s229, %s230
      %s232 = scalar_lea.vmem %s3, %s231
      %p233 = pneg %p156
      %p234 = pneg %p153
      %p235 = scmp.lt.s32.totalorder %s20, 1
      %s236 = scalar_select %p235, %s20, 1
      %p237 = scmp.lt.s32.totalorder %s21, 0
      %s238 = scalar_select %p237, %s21, 0
      %s239 = smul.addr %s238, 2
      %s240 = smul.addr %s236, 2
      %s241 = sadd.s32 %s239, %s240
      %s242 = scalar_lea.vmem %s4, %s241
      %s243 = smul.u32 32, %s21
      %p244 = scmp.lt.s32.totalorder %s20, 1
      %s245 = scalar_select %p244, %s20, 1
      %p246 = scmp.lt.s32.totalorder %s243, 31
      %s247 = scalar_select %p246, %s243, 31
      %s248 = smul.addr %s245, 32
      %s249 = sadd.s32 %s247, %s248
      %s250 = smul.addr %s249, 4
      %s251 = scalar_lea.vmem %s0, %s250
      %s252 = smul.u32 32, %s21
      %s253 = smul.u32 32, %s21
      %p254 = scmp.lt.s32.totalorder %s20, 1
      %s255 = scalar_select %p254, %s20, 1
      %p256 = scmp.lt.s32.totalorder %s253, 31
      %s257 = scalar_select %p256, %s253, 31
      %s258 = smul.addr %s257, 2
      %s259 = smul.addr %s255, 64
      %s260 = sadd.s32 %s258, %s259
      %s261 = smul.addr %s260, 4
      %s262 = scalar_lea.vmem %s2, %s261
      %s263 = smul.u32 32, %s21
      %p264 = scmp.lt.s32.totalorder %s20, 1
      %s265 = scalar_select %p264, %s20, 1
      %p266 = scmp.lt.s32.totalorder %s21, 0
      %s267 = scalar_select %p266, %s21, 0
      %s268 = smul.addr %s267, 2
      %s269 = smul.addr %s265, 2
      %s270 = sadd.s32 %s268, %s269
      %s271 = scalar_lea.vmem %s3, %s270
      %p272 = scmp.lt.s32.totalorder %s20, 1
      %s273 = scalar_select %p272, %s20, 1
      %p274 = scmp.lt.s32.totalorder %s21, 0
      %s275 = scalar_select %p274, %s21, 0
      %s276 = smul.addr %s275, 2
      %s277 = smul.addr %s273, 2
      %s278 = sadd.s32 %s276, %s277
      %s279 = scalar_lea.vmem %s4, %s278
      %v281 = vld [vmem:[%s251] sm:$0xf]
      %v282 = vld [vmem:[%s251 + $0x4] sm:$0xf]
      %v283 = vld [vmem:[%s251 + $0x8] sm:$0xf]
      %v284 = vld [vmem:[%s251 + $0xc] sm:$0xf]
      %v285 = vld [vmem:[%s251 + $0x10] sm:$0xf]
      %v286 = vld [vmem:[%s251 + $0x14] sm:$0xf]
      %v287 = vld [vmem:[%s251 + $0x18] sm:$0xf]
      %v288 = vld [vmem:[%s251 + $0x1c] sm:$0xf]
      %v289 = vld [vmem:[%s251 + $0x20] sm:$0xf]
      %v290 = vld [vmem:[%s251 + $0x24] sm:$0xf]
      %v291 = vld [vmem:[%s251 + $0x28] sm:$0xf]
      %v292 = vld [vmem:[%s251 + $0x2c] sm:$0xf]
      %v293 = vld [vmem:[%s251 + $0x30] sm:$0xf]
      %v294 = vld [vmem:[%s251 + $0x34] sm:$0xf]
      %v295 = vld [vmem:[%s251 + $0x38] sm:$0xf]
      %v296 = vld [vmem:[%s251 + $0x3c] sm:$0xf]
      %v297 = vld [vmem:[%s251 + $0x40] sm:$0xf]
      %v298 = vld [vmem:[%s251 + $0x44] sm:$0xf]
      %v299 = vld [vmem:[%s251 + $0x48] sm:$0xf]
      %v300 = vld [vmem:[%s251 + $0x4c] sm:$0xf]
      %v301 = vld [vmem:[%s251 + $0x50] sm:$0xf]
      %v302 = vld [vmem:[%s251 + $0x54] sm:$0xf]
      %v303 = vld [vmem:[%s251 + $0x58] sm:$0xf]
      %v304 = vld [vmem:[%s251 + $0x5c] sm:$0xf]
      %v305 = vld [vmem:[%s251 + $0x60] sm:$0xf]
      %v306 = vld [vmem:[%s251 + $0x64] sm:$0xf]
      %v307 = vld [vmem:[%s251 + $0x68] sm:$0xf]
      %v308 = vld [vmem:[%s251 + $0x6c] sm:$0xf]
      %v309 = vld [vmem:[%s251 + $0x70] sm:$0xf]
      %v310 = vld [vmem:[%s251 + $0x74] sm:$0xf]
      %v311 = vld [vmem:[%s251 + $0x78] sm:$0xf]
      %v312 = vld [vmem:[%s251 + $0x7c] sm:$0xf]
      %v313 = vld [vmem:[%s1] sm:$0xff]
      %v314 = vld [vmem:[%s1 + $0x8] sm:$0xff]
      %v347 = vunpack.c.l.b16 %v281
      %v348 = vunpack.c.l.b16 %v282
      %v349 = vunpack.c.l.b16 %v283
      %v350 = vunpack.c.l.b16 %v284
      %v351 = vunpack.c.l.b16 %v285
      %v352 = vunpack.c.l.b16 %v286
      %v353 = vunpack.c.l.b16 %v287
      %v354 = vunpack.c.l.b16 %v288
      %v355 = vunpack.c.l.b16 %v289
      %v356 = vunpack.c.l.b16 %v290
      %v357 = vunpack.c.l.b16 %v291
      %v358 = vunpack.c.l.b16 %v292
      %v359 = vunpack.c.l.b16 %v293
      %v360 = vunpack.c.l.b16 %v294
      %v361 = vunpack.c.l.b16 %v295
      %v362 = vunpack.c.l.b16 %v296
      %v363 = vunpack.c.l.b16 %v297
      %v364 = vunpack.c.l.b16 %v298
      %v365 = vunpack.c.l.b16 %v299
      %v366 = vunpack.c.l.b16 %v300
      %v367 = vunpack.c.l.b16 %v301
      %v368 = vunpack.c.l.b16 %v302
      %v369 = vunpack.c.l.b16 %v303
      %v370 = vunpack.c.l.b16 %v304
      %v371 = vunpack.c.l.b16 %v305
      %v372 = vunpack.c.l.b16 %v306
      %v373 = vunpack.c.l.b16 %v307
      %v374 = vunpack.c.l.b16 %v308
      %v375 = vunpack.c.l.b16 %v309
      %v376 = vunpack.c.l.b16 %v310
      %v377 = vunpack.c.l.b16 %v311
      %v378 = vunpack.c.l.b16 %v312
      %v379 = vpack.c.b16 %v348, %v347
      %v380 = vpack.c.b16 %v350, %v349
      %v381 = vpack.c.b16 %v352, %v351
      %v382 = vpack.c.b16 %v354, %v353
      %v383 = vpack.c.b16 %v356, %v355
      %v384 = vpack.c.b16 %v358, %v357
      %v385 = vpack.c.b16 %v360, %v359
      %v386 = vpack.c.b16 %v362, %v361
      %v387 = vpack.c.b16 %v364, %v363
      %v388 = vpack.c.b16 %v366, %v365
      %v389 = vpack.c.b16 %v368, %v367
      %v390 = vpack.c.b16 %v370, %v369
      %v391 = vpack.c.b16 %v372, %v371
      %v392 = vpack.c.b16 %v374, %v373
      %v393 = vpack.c.b16 %v376, %v375
      %v394 = vpack.c.b16 %v378, %v377
      %v397 = vunpack.c.l.b16 %v313
      %v398 = vunpack.c.h.b16 %v313
      %v399 = vunpack.c.l.b16 %v314
      %v400 = vunpack.c.h.b16 %v314
      %v401 = vpack.c.b16 %v399, %v397
      %v402 = vpack.c.b16 %v400, %v398
      %vm405 = vcmask 130048
      %v407 = vsel %vm405, %v379, 0
      %v410 = vsel %vm405, %v380, 0
      %v413 = vsel %vm405, %v381, 0
      %v416 = vsel %vm405, %v382, 0
      %v419 = vsel %vm405, %v383, 0
      %v422 = vsel %vm405, %v384, 0
      %v425 = vsel %vm405, %v385, 0
      %v428 = vsel %vm405, %v386, 0
      %v431 = vsel %vm405, %v387, 0
      %v434 = vsel %vm405, %v388, 0
      %v437 = vsel %vm405, %v389, 0
      %v440 = vsel %vm405, %v390, 0
      %v443 = vsel %vm405, %v391, 0
      %v446 = vsel %vm405, %v392, 0
      %v449 = vsel %vm405, %v393, 0
      %v452 = vsel %vm405, %v394, 0
      %454 = vmatprep.subr.bf16.mxu0 0
      %455 = vmatpush1.bf16.msra.mxu0 0
      %456 = vmatprep.subr.bf16.mxu0 0
      %457 = vmatpush1.bf16.msra.mxu0 0
      %458 = vmatprep.subr.bf16.mxu0 0
      %459 = vmatpush1.bf16.msra.mxu0 0
      %460 = vmatprep.subr.bf16.mxu0 0
      %461 = vmatpush1.bf16.msra.mxu0 0
      %462 = vmatprep.subr.bf16.mxu0 0
      %463 = vmatpush1.bf16.msra.mxu0 0
      %464 = vmatprep.subr.bf16.mxu0 0
      %465 = vmatpush1.bf16.msra.mxu0 0
      %466 = vmatprep.subr.bf16.mxu0 0
      %467 = vmatpush1.bf16.msra.mxu0 0
      %468 = vmatprep.subr.bf16.mxu0 %v402
      %469 = vmatpush1.bf16.msra.mxu0 %v401
      %470 = vmatprep.subr.bf16.mxu0 0
      %471 = vmatpush2.bf16.msra.mxu0 0
      %472 = vmatprep.subr.bf16.mxu0 0
      %473 = vmatpush2.bf16.msra.mxu0 0
      %474 = vmatprep.subr.bf16.mxu0 0
      %475 = vmatpush2.bf16.msra.mxu0 0
      %476 = vmatprep.subr.bf16.mxu0 0
      %477 = vmatpush2.bf16.msra.mxu0 0
      %478 = vmatprep.subr.bf16.mxu0 0
      %479 = vmatpush2.bf16.msra.mxu0 0
      %480 = vmatprep.subr.bf16.mxu0 0
      %481 = vmatpush2.bf16.msra.mxu0 0
      %482 = vmatprep.subr.bf16.mxu0 0
      %483 = vmatpush2.bf16.msra.mxu0 0
      %484 = vmatprep.subr.bf16.mxu0 0
      %485 = vmatpush2.bf16.msra.mxu0 0
      %486 = vmatprep.mubr.bf16.mxu0 0
      %487 = vmatmul.mubr.bf16.gmra.mxu0 %v407
      %v488 = vpop.f32.mrf.mxu0
      %v489 = vadd.f32 0.0, %v488
      %v490 = vpop.f32.mrf.mxu0
      %v491 = vadd.f32 0.0, %v490
      %v492 = vpop.f32.mrf.mxu0
      %v493 = vadd.f32 0.0, %v492
      %v494 = vpop.f32.mrf.mxu0
      %v495 = vadd.f32 0.0, %v494
      %496 = vmatprep.mubr.bf16.mxu0 0
      %497 = vmatmul.mubr.bf16.gmra.mxu0 %v410
      %v498 = vpop.f32.mrf.mxu0
      %v499 = vadd.f32 0.0, %v498
      %v500 = vpop.f32.mrf.mxu0
      %v501 = vadd.f32 0.0, %v500
      %v502 = vpop.f32.mrf.mxu0
      %v503 = vadd.f32 0.0, %v502
      %v504 = vpop.f32.mrf.mxu0
      %v505 = vadd.f32 0.0, %v504
      %506 = vmatprep.mubr.bf16.mxu0 0
      %507 = vmatmul.mubr.bf16.gmra.mxu0 %v413
      %v508 = vpop.f32.mrf.mxu0
      %v509 = vadd.f32 0.0, %v508
      %v510 = vpop.f32.mrf.mxu0
      %v511 = vadd.f32 0.0, %v510
      %v512 = vpop.f32.mrf.mxu0
      %v513 = vadd.f32 0.0, %v512
      %v514 = vpop.f32.mrf.mxu0
      %v515 = vadd.f32 0.0, %v514
      %516 = vmatprep.mubr.bf16.mxu0 0
      %517 = vmatmul.mubr.bf16.gmra.mxu0 %v416
      %v518 = vpop.f32.mrf.mxu0
      %v519 = vadd.f32 0.0, %v518
      %v520 = vpop.f32.mrf.mxu0
      %v521 = vadd.f32 0.0, %v520
      %v522 = vpop.f32.mrf.mxu0
      %v523 = vadd.f32 0.0, %v522
      %v524 = vpop.f32.mrf.mxu0
      %v525 = vadd.f32 0.0, %v524
      %526 = vmatprep.mubr.bf16.mxu0 0
      %527 = vmatmul.mubr.bf16.gmra.mxu0 %v419
      %v528 = vpop.f32.mrf.mxu0
      %v529 = vadd.f32 0.0, %v528
      %v530 = vpop.f32.mrf.mxu0
      %v531 = vadd.f32 0.0, %v530
      %v532 = vpop.f32.mrf.mxu0
      %v533 = vadd.f32 0.0, %v532
      %v534 = vpop.f32.mrf.mxu0
      %v535 = vadd.f32 0.0, %v534
      %536 = vmatprep.mubr.bf16.mxu0 0
      %537 = vmatmul.mubr.bf16.gmra.mxu0 %v422
      %v538 = vpop.f32.mrf.mxu0
      %v539 = vadd.f32 0.0, %v538
      %v540 = vpop.f32.mrf.mxu0
      %v541 = vadd.f32 0.0, %v540
      %v542 = vpop.f32.mrf.mxu0
      %v543 = vadd.f32 0.0, %v542
      %v544 = vpop.f32.mrf.mxu0
      %v545 = vadd.f32 0.0, %v544
      %546 = vmatprep.mubr.bf16.mxu0 0
      %547 = vmatmul.mubr.bf16.gmra.mxu0 %v425
      %v548 = vpop.f32.mrf.mxu0
      %v549 = vadd.f32 0.0, %v548
      %v550 = vpop.f32.mrf.mxu0
      %v551 = vadd.f32 0.0, %v550
      %v552 = vpop.f32.mrf.mxu0
      %v553 = vadd.f32 0.0, %v552
      %v554 = vpop.f32.mrf.mxu0
      %v555 = vadd.f32 0.0, %v554
      %556 = vmatprep.mubr.bf16.mxu0 0
      %557 = vmatmul.mubr.bf16.gmra.mxu0 %v428
      %v558 = vpop.f32.mrf.mxu0
      %v559 = vadd.f32 0.0, %v558
      %v560 = vpop.f32.mrf.mxu0
      %v561 = vadd.f32 0.0, %v560
      %v562 = vpop.f32.mrf.mxu0
      %v563 = vadd.f32 0.0, %v562
      %v564 = vpop.f32.mrf.mxu0
      %v565 = vadd.f32 0.0, %v564
      %566 = vmatprep.mubr.bf16.mxu0 0
      %567 = vmatmul.mubr.bf16.gmra.mxu0 %v431
      %v568 = vpop.f32.mrf.mxu0
      %v569 = vadd.f32 0.0, %v568
      %v570 = vpop.f32.mrf.mxu0
      %v571 = vadd.f32 0.0, %v570
      %v572 = vpop.f32.mrf.mxu0
      %v573 = vadd.f32 0.0, %v572
      %v574 = vpop.f32.mrf.mxu0
      %v575 = vadd.f32 0.0, %v574
      %576 = vmatprep.mubr.bf16.mxu0 0
      %577 = vmatmul.mubr.bf16.gmra.mxu0 %v434
      %v578 = vpop.f32.mrf.mxu0
      %v579 = vadd.f32 0.0, %v578
      %v580 = vpop.f32.mrf.mxu0
      %v581 = vadd.f32 0.0, %v580
      %v582 = vpop.f32.mrf.mxu0
      %v583 = vadd.f32 0.0, %v582
      %v584 = vpop.f32.mrf.mxu0
      %v585 = vadd.f32 0.0, %v584
      %586 = vmatprep.mubr.bf16.mxu0 0
      %587 = vmatmul.mubr.bf16.gmra.mxu0 %v437
      %v588 = vpop.f32.mrf.mxu0
      %v589 = vadd.f32 0.0, %v588
      %v590 = vpop.f32.mrf.mxu0
      %v591 = vadd.f32 0.0, %v590
      %v592 = vpop.f32.mrf.mxu0
      %v593 = vadd.f32 0.0, %v592
      %v594 = vpop.f32.mrf.mxu0
      %v595 = vadd.f32 0.0, %v594
      %596 = vmatprep.mubr.bf16.mxu0 0
      %597 = vmatmul.mubr.bf16.gmra.mxu0 %v440
      %v598 = vpop.f32.mrf.mxu0
      %v599 = vadd.f32 0.0, %v598
      %v600 = vpop.f32.mrf.mxu0
      %v601 = vadd.f32 0.0, %v600
      %v602 = vpop.f32.mrf.mxu0
      %v603 = vadd.f32 0.0, %v602
      %v604 = vpop.f32.mrf.mxu0
      %v605 = vadd.f32 0.0, %v604
      %606 = vmatprep.mubr.bf16.mxu0 0
      %607 = vmatmul.mubr.bf16.gmra.mxu0 %v443
      %v608 = vpop.f32.mrf.mxu0
      %v609 = vadd.f32 0.0, %v608
      %v610 = vpop.f32.mrf.mxu0
      %v611 = vadd.f32 0.0, %v610
      %v612 = vpop.f32.mrf.mxu0
      %v613 = vadd.f32 0.0, %v612
      %v614 = vpop.f32.mrf.mxu0
      %v615 = vadd.f32 0.0, %v614
      %616 = vmatprep.mubr.bf16.mxu0 0
      %617 = vmatmul.mubr.bf16.gmra.mxu0 %v446
      %v618 = vpop.f32.mrf.mxu0
      %v619 = vadd.f32 0.0, %v618
      %v620 = vpop.f32.mrf.mxu0
      %v621 = vadd.f32 0.0, %v620
      %v622 = vpop.f32.mrf.mxu0
      %v623 = vadd.f32 0.0, %v622
      %v624 = vpop.f32.mrf.mxu0
      %v625 = vadd.f32 0.0, %v624
      %626 = vmatprep.mubr.bf16.mxu0 0
      %627 = vmatmul.mubr.bf16.gmra.mxu0 %v449
      %v628 = vpop.f32.mrf.mxu0
      %v629 = vadd.f32 0.0, %v628
      %v630 = vpop.f32.mrf.mxu0
      %v631 = vadd.f32 0.0, %v630
      %v632 = vpop.f32.mrf.mxu0
      %v633 = vadd.f32 0.0, %v632
      %v634 = vpop.f32.mrf.mxu0
      %v635 = vadd.f32 0.0, %v634
      %636 = vmatprep.mubr.bf16.mxu0 0
      %637 = vmatmul.mubr.bf16.gmra.mxu0 %v452
      %v638 = vpop.f32.mrf.mxu0
      %v639 = vadd.f32 0.0, %v638
      %v640 = vpop.f32.mrf.mxu0
      %v641 = vadd.f32 0.0, %v640
      %v642 = vpop.f32.mrf.mxu0
      %v643 = vadd.f32 0.0, %v642
      %v644 = vpop.f32.mrf.mxu0
      %v645 = vadd.f32 0.0, %v644
      %646 = vdwg.mxu0
      %v647 = vpack.c.bf16 %v493, %v489
      %v648 = vpack.c.bf16 %v495, %v491
      %v649 = vpack.c.bf16 %v503, %v499
      %v650 = vpack.c.bf16 %v505, %v501
      %v651 = vpack.c.bf16 %v513, %v509
      %v652 = vpack.c.bf16 %v515, %v511
      %v653 = vpack.c.bf16 %v523, %v519
      %v654 = vpack.c.bf16 %v525, %v521
      %v655 = vpack.c.bf16 %v533, %v529
      %v656 = vpack.c.bf16 %v535, %v531
      %v657 = vpack.c.bf16 %v543, %v539
      %v658 = vpack.c.bf16 %v545, %v541
      %v659 = vpack.c.bf16 %v553, %v549
      %v660 = vpack.c.bf16 %v555, %v551
      %v661 = vpack.c.bf16 %v563, %v559
      %v662 = vpack.c.bf16 %v565, %v561
      %v663 = vpack.c.bf16 %v573, %v569
      %v664 = vpack.c.bf16 %v575, %v571
      %v665 = vpack.c.bf16 %v583, %v579
      %v666 = vpack.c.bf16 %v585, %v581
      %v667 = vpack.c.bf16 %v593, %v589
      %v668 = vpack.c.bf16 %v595, %v591
      %v669 = vpack.c.bf16 %v603, %v599
      %v670 = vpack.c.bf16 %v605, %v601
      %v671 = vpack.c.bf16 %v613, %v609
      %v672 = vpack.c.bf16 %v615, %v611
      %v673 = vpack.c.bf16 %v623, %v619
      %v674 = vpack.c.bf16 %v625, %v621
      %v675 = vpack.c.bf16 %v633, %v629
      %v676 = vpack.c.bf16 %v635, %v631
      %v677 = vpack.c.bf16 %v643, %v639
      %v678 = vpack.c.bf16 %v645, %v641
      %v711 = vunpack.c.l.b16 %v647
      %v712 = vunpack.c.l.b16 %v648
      %v713 = vunpack.c.h.b16 %v647
      %v714 = vunpack.c.h.b16 %v648
      %v715 = vunpack.c.l.b16 %v649
      %v716 = vunpack.c.l.b16 %v650
      %v717 = vunpack.c.h.b16 %v649
      %v718 = vunpack.c.h.b16 %v650
      %v719 = vunpack.c.l.b16 %v651
      %v720 = vunpack.c.l.b16 %v652
      %v721 = vunpack.c.h.b16 %v651
      %v722 = vunpack.c.h.b16 %v652
      %v723 = vunpack.c.l.b16 %v653
      %v724 = vunpack.c.l.b16 %v654
      %v725 = vunpack.c.h.b16 %v653
      %v726 = vunpack.c.h.b16 %v654
      %v727 = vunpack.c.l.b16 %v655
      %v728 = vunpack.c.l.b16 %v656
      %v729 = vunpack.c.h.b16 %v655
      %v730 = vunpack.c.h.b16 %v656
      %v731 = vunpack.c.l.b16 %v657
      %v732 = vunpack.c.l.b16 %v658
      %v733 = vunpack.c.h.b16 %v657
      %v734 = vunpack.c.h.b16 %v658
      %v735 = vunpack.c.l.b16 %v659
      %v736 = vunpack.c.l.b16 %v660
      %v737 = vunpack.c.h.b16 %v659
      %v738 = vunpack.c.h.b16 %v660
      %v739 = vunpack.c.l.b16 %v661
      %v740 = vunpack.c.l.b16 %v662
      %v741 = vunpack.c.h.b16 %v661
      %v742 = vunpack.c.h.b16 %v662
      %v743 = vunpack.c.l.b16 %v663
      %v744 = vunpack.c.l.b16 %v664
      %v745 = vunpack.c.h.b16 %v663
      %v746 = vunpack.c.h.b16 %v664
      %v747 = vunpack.c.l.b16 %v665
      %v748 = vunpack.c.l.b16 %v666
      %v749 = vunpack.c.h.b16 %v665
      %v750 = vunpack.c.h.b16 %v666
      %v751 = vunpack.c.l.b16 %v667
      %v752 = vunpack.c.l.b16 %v668
      %v753 = vunpack.c.h.b16 %v667
      %v754 = vunpack.c.h.b16 %v668
      %v755 = vunpack.c.l.b16 %v669
      %v756 = vunpack.c.l.b16 %v670
      %v757 = vunpack.c.h.b16 %v669
      %v758 = vunpack.c.h.b16 %v670
      %v759 = vunpack.c.l.b16 %v671
      %v760 = vunpack.c.l.b16 %v672
      %v761 = vunpack.c.h.b16 %v671
      %v762 = vunpack.c.h.b16 %v672
      %v763 = vunpack.c.l.b16 %v673
      %v764 = vunpack.c.l.b16 %v674
      %v765 = vunpack.c.h.b16 %v673
      %v766 = vunpack.c.h.b16 %v674
      %v767 = vunpack.c.l.b16 %v675
      %v768 = vunpack.c.l.b16 %v676
      %v769 = vunpack.c.h.b16 %v675
      %v770 = vunpack.c.h.b16 %v676
      %v771 = vunpack.c.l.b16 %v677
      %v772 = vunpack.c.l.b16 %v678
      %v773 = vunpack.c.h.b16 %v677
      %v774 = vunpack.c.h.b16 %v678
      %v775 = vpack.c.b16 %v712, %v711
      %v776 = vpack.c.b16 %v714, %v713
      %v777 = vpack.c.b16 %v716, %v715
      %v778 = vpack.c.b16 %v718, %v717
      %v779 = vpack.c.b16 %v720, %v719
      %v780 = vpack.c.b16 %v722, %v721
      %v781 = vpack.c.b16 %v724, %v723
      %v782 = vpack.c.b16 %v726, %v725
      %v783 = vpack.c.b16 %v728, %v727
      %v784 = vpack.c.b16 %v730, %v729
      %v785 = vpack.c.b16 %v732, %v731
      %v786 = vpack.c.b16 %v734, %v733
      %v787 = vpack.c.b16 %v736, %v735
      %v788 = vpack.c.b16 %v738, %v737
      %v789 = vpack.c.b16 %v740, %v739
      %v790 = vpack.c.b16 %v742, %v741
      %v791 = vpack.c.b16 %v744, %v743
      %v792 = vpack.c.b16 %v746, %v745
      %v793 = vpack.c.b16 %v748, %v747
      %v794 = vpack.c.b16 %v750, %v749
      %v795 = vpack.c.b16 %v752, %v751
      %v796 = vpack.c.b16 %v754, %v753
      %v797 = vpack.c.b16 %v756, %v755
      %v798 = vpack.c.b16 %v758, %v757
      %v799 = vpack.c.b16 %v760, %v759
      %v800 = vpack.c.b16 %v762, %v761
      %v801 = vpack.c.b16 %v764, %v763
      %v802 = vpack.c.b16 %v766, %v765
      %v803 = vpack.c.b16 %v768, %v767
      %v804 = vpack.c.b16 %v770, %v769
      %v805 = vpack.c.b16 %v772, %v771
      %v806 = vpack.c.b16 %v774, %v773
      %839 = vst [vmem:[%s262] sm:$0xff] %v775
      %840 = vst [vmem:[%s262 + $0x8] sm:$0xff] %v776
      %841 = vst [vmem:[%s262 + $0x10] sm:$0xff] %v777
      %842 = vst [vmem:[%s262 + $0x18] sm:$0xff] %v778
      %843 = vst [vmem:[%s262 + $0x20] sm:$0xff] %v779
      %844 = vst [vmem:[%s262 + $0x28] sm:$0xff] %v780
      %845 = vst [vmem:[%s262 + $0x30] sm:$0xff] %v781
      %846 = vst [vmem:[%s262 + $0x38] sm:$0xff] %v782
      %847 = vst [vmem:[%s262 + $0x40] sm:$0xff] %v783
      %848 = vst [vmem:[%s262 + $0x48] sm:$0xff] %v784
      %849 = vst [vmem:[%s262 + $0x50] sm:$0xff] %v785
      %850 = vst [vmem:[%s262 + $0x58] sm:$0xff] %v786
      %851 = vst [vmem:[%s262 + $0x60] sm:$0xff] %v787
      %852 = vst [vmem:[%s262 + $0x68] sm:$0xff] %v788
      %853 = vst [vmem:[%s262 + $0x70] sm:$0xff] %v789
      %854 = vst [vmem:[%s262 + $0x78] sm:$0xff] %v790
      %855 = vst [vmem:[%s262 + $0x80] sm:$0xff] %v791
      %856 = vst [vmem:[%s262 + $0x88] sm:$0xff] %v792
      %857 = vst [vmem:[%s262 + $0x90] sm:$0xff] %v793
      %858 = vst [vmem:[%s262 + $0x98] sm:$0xff] %v794
      %859 = vst [vmem:[%s262 + $0xa0] sm:$0xff] %v795
      %860 = vst [vmem:[%s262 + $0xa8] sm:$0xff] %v796
      %861 = vst [vmem:[%s262 + $0xb0] sm:$0xff] %v797
      %862 = vst [vmem:[%s262 + $0xb8] sm:$0xff] %v798
      %863 = vst [vmem:[%s262 + $0xc0] sm:$0xff] %v799
      %864 = vst [vmem:[%s262 + $0xc8] sm:$0xff] %v800
      %865 = vst [vmem:[%s262 + $0xd0] sm:$0xff] %v801
      %866 = vst [vmem:[%s262 + $0xd8] sm:$0xff] %v802
      %867 = vst [vmem:[%s262 + $0xe0] sm:$0xff] %v803
      %868 = vst [vmem:[%s262 + $0xe8] sm:$0xff] %v804
      %869 = vst [vmem:[%s262 + $0xf0] sm:$0xff] %v805
      %870 = vst [vmem:[%s262 + $0xf8] sm:$0xff] %v806
      %v871 = vadd.f32 %v489, %v493
      %v872 = vadd.f32 %v871, %v499
      %v873 = vadd.f32 %v872, %v503
      %v874 = vadd.f32 %v873, %v509
      %v875 = vadd.f32 %v874, %v513
      %v876 = vadd.f32 %v875, %v519
      %v877 = vadd.f32 %v876, %v523
      %v878 = vadd.f32 %v877, %v529
      %v879 = vadd.f32 %v878, %v533
      %v880 = vadd.f32 %v879, %v539
      %v881 = vadd.f32 %v880, %v543
      %v882 = vadd.f32 %v881, %v549
      %v883 = vadd.f32 %v882, %v553
      %v884 = vadd.f32 %v883, %v559
      %v885 = vadd.f32 %v884, %v563
      %v886 = vadd.f32 %v885, %v569
      %v887 = vadd.f32 %v886, %v573
      %v888 = vadd.f32 %v887, %v579
      %v889 = vadd.f32 %v888, %v583
      %v890 = vadd.f32 %v889, %v589
      %v891 = vadd.f32 %v890, %v593
      %v892 = vadd.f32 %v891, %v599
      %v893 = vadd.f32 %v892, %v603
      %v894 = vadd.f32 %v893, %v609
      %v895 = vadd.f32 %v894, %v613
      %v896 = vadd.f32 %v895, %v619
      %v897 = vadd.f32 %v896, %v623
      %v898 = vadd.f32 %v897, %v629
      %v899 = vadd.f32 %v898, %v633
      %v900 = vadd.f32 %v899, %v639
      %v901 = vadd.f32 %v900, %v643
      %v902 = vrot.slane %v901, 4
      %v903 = vadd.f32 %v901, %v902
      %v904 = vrot.slane %v903, 2
      %v905 = vadd.f32 %v903, %v904
      %v906 = vrot.slane %v905, 1
      %v907 = vadd.f32 %v905, %v906
      %v908 = vadd.f32 %v491, %v495
      %v909 = vadd.f32 %v908, %v501
      %v910 = vadd.f32 %v909, %v505
      %v911 = vadd.f32 %v910, %v511
      %v912 = vadd.f32 %v911, %v515
      %v913 = vadd.f32 %v912, %v521
      %v914 = vadd.f32 %v913, %v525
      %v915 = vadd.f32 %v914, %v531
      %v916 = vadd.f32 %v915, %v535
      %v917 = vadd.f32 %v916, %v541
      %v918 = vadd.f32 %v917, %v545
      %v919 = vadd.f32 %v918, %v551
      %v920 = vadd.f32 %v919, %v555
      %v921 = vadd.f32 %v920, %v561
      %v922 = vadd.f32 %v921, %v565
      %v923 = vadd.f32 %v922, %v571
      %v924 = vadd.f32 %v923, %v575
      %v925 = vadd.f32 %v924, %v581
      %v926 = vadd.f32 %v925, %v585
      %v927 = vadd.f32 %v926, %v591
      %v928 = vadd.f32 %v927, %v595
      %v929 = vadd.f32 %v928, %v601
      %v930 = vadd.f32 %v929, %v605
      %v931 = vadd.f32 %v930, %v611
      %v932 = vadd.f32 %v931, %v615
      %v933 = vadd.f32 %v932, %v621
      %v934 = vadd.f32 %v933, %v625
      %v935 = vadd.f32 %v934, %v631
      %v936 = vadd.f32 %v935, %v635
      %v937 = vadd.f32 %v936, %v641
      %v938 = vadd.f32 %v937, %v645
      %v939 = vrot.slane %v938, 4
      %v940 = vadd.f32 %v938, %v939
      %v941 = vrot.slane %v940, 2
      %v942 = vadd.f32 %v940, %v941
      %v943 = vrot.slane %v942, 1
      %v944 = vadd.f32 %v942, %v943
      %v947 = vcombine.low %v907, %v944
      %v949 = vunpack.c.l.s4 1966171168
      %v950 = vunpack.c.0.s8 %v949
      %v951 = vlaneseq
      %v952 = vshrl.u32 %v951, 7
      %v953 = vsub.s32 %v950, %v952
      %v954 = vrot.slane %v947, %v953
      %v956 = vunpack.c.l.s4 1966171168
      %v957 = vunpack.c.0.s8 %v956
      %v958 = vlaneseq
      %v959 = vshrl.u32 %v958, 7
      %v960 = vsub.s32 %v957, %v959
      %v961 = vrot.slane %v954, %v960
      %v963 = vlaneseq
      %vm964 = vcmp.ge.s32.totalorder %v963, 0
      %vm965 = vcmp.lt.s32.totalorder %v963, 256
      %vm966 = vmand %vm964, %vm965
      %967 = vst.msk [vmem:[%s271] sm:$0x3] %vm966, %v961
      %v968 = vmul.f32 %v489, %v489
      %v969 = vmul.f32 %v491, %v491
      %v970 = vmul.f32 %v493, %v493
      %v971 = vmul.f32 %v495, %v495
      %v972 = vmul.f32 %v499, %v499
      %v973 = vmul.f32 %v501, %v501
      %v974 = vmul.f32 %v503, %v503
      %v975 = vmul.f32 %v505, %v505
      %v976 = vmul.f32 %v509, %v509
      %v977 = vmul.f32 %v511, %v511
      %v978 = vmul.f32 %v513, %v513
      %v979 = vmul.f32 %v515, %v515
      %v980 = vmul.f32 %v519, %v519
      %v981 = vmul.f32 %v521, %v521
      %v982 = vmul.f32 %v523, %v523
      %v983 = vmul.f32 %v525, %v525
      %v984 = vmul.f32 %v529, %v529
      %v985 = vmul.f32 %v531, %v531
      %v986 = vmul.f32 %v533, %v533
      %v987 = vmul.f32 %v535, %v535
      %v988 = vmul.f32 %v539, %v539
      %v989 = vmul.f32 %v541, %v541
      %v990 = vmul.f32 %v543, %v543
      %v991 = vmul.f32 %v545, %v545
      %v992 = vmul.f32 %v549, %v549
      %v993 = vmul.f32 %v551, %v551
      %v994 = vmul.f32 %v553, %v553
      %v995 = vmul.f32 %v555, %v555
      %v996 = vmul.f32 %v559, %v559
      %v997 = vmul.f32 %v561, %v561
      %v998 = vmul.f32 %v563, %v563
      %v999 = vmul.f32 %v565, %v565
      %v1000 = vmul.f32 %v569, %v569
      %v1001 = vmul.f32 %v571, %v571
      %v1002 = vmul.f32 %v573, %v573
      %v1003 = vmul.f32 %v575, %v575
      %v1004 = vmul.f32 %v579, %v579
      %v1005 = vmul.f32 %v581, %v581
      %v1006 = vmul.f32 %v583, %v583
      %v1007 = vmul.f32 %v585, %v585
      %v1008 = vmul.f32 %v589, %v589
      %v1009 = vmul.f32 %v591, %v591
      %v1010 = vmul.f32 %v593, %v593
      %v1011 = vmul.f32 %v595, %v595
      %v1012 = vmul.f32 %v599, %v599
      %v1013 = vmul.f32 %v601, %v601
      %v1014 = vmul.f32 %v603, %v603
      %v1015 = vmul.f32 %v605, %v605
      %v1016 = vmul.f32 %v609, %v609
      %v1017 = vmul.f32 %v611, %v611
      %v1018 = vmul.f32 %v613, %v613
      %v1019 = vmul.f32 %v615, %v615
      %v1020 = vmul.f32 %v619, %v619
      %v1021 = vmul.f32 %v621, %v621
      %v1022 = vmul.f32 %v623, %v623
      %v1023 = vmul.f32 %v625, %v625
      %v1024 = vmul.f32 %v629, %v629
      %v1025 = vmul.f32 %v631, %v631
      %v1026 = vmul.f32 %v633, %v633
      %v1027 = vmul.f32 %v635, %v635
      %v1028 = vmul.f32 %v639, %v639
      %v1029 = vmul.f32 %v641, %v641
      %v1030 = vmul.f32 %v643, %v643
      %v1031 = vmul.f32 %v645, %v645
      %v1032 = vadd.f32 %v968, %v970
      %v1033 = vadd.f32 %v1032, %v972
      %v1034 = vadd.f32 %v1033, %v974
      %v1035 = vadd.f32 %v1034, %v976
      %v1036 = vadd.f32 %v1035, %v978
      %v1037 = vadd.f32 %v1036, %v980
      %v1038 = vadd.f32 %v1037, %v982
      %v1039 = vadd.f32 %v1038, %v984
      %v1040 = vadd.f32 %v1039, %v986
      %v1041 = vadd.f32 %v1040, %v988
      %v1042 = vadd.f32 %v1041, %v990
      %v1043 = vadd.f32 %v1042, %v992
      %v1044 = vadd.f32 %v1043, %v994
      %v1045 = vadd.f32 %v1044, %v996
      %v1046 = vadd.f32 %v1045, %v998
      %v1047 = vadd.f32 %v1046, %v1000
      %v1048 = vadd.f32 %v1047, %v1002
      %v1049 = vadd.f32 %v1048, %v1004
      %v1050 = vadd.f32 %v1049, %v1006
      %v1051 = vadd.f32 %v1050, %v1008
      %v1052 = vadd.f32 %v1051, %v1010
      %v1053 = vadd.f32 %v1052, %v1012
      %v1054 = vadd.f32 %v1053, %v1014
      %v1055 = vadd.f32 %v1054, %v1016
      %v1056 = vadd.f32 %v1055, %v1018
      %v1057 = vadd.f32 %v1056, %v1020
      %v1058 = vadd.f32 %v1057, %v1022
      %v1059 = vadd.f32 %v1058, %v1024
      %v1060 = vadd.f32 %v1059, %v1026
      %v1061 = vadd.f32 %v1060, %v1028
      %v1062 = vadd.f32 %v1061, %v1030
      %v1063 = vrot.slane %v1062, 4
      %v1064 = vadd.f32 %v1062, %v1063
      %v1065 = vrot.slane %v1064, 2
      %v1066 = vadd.f32 %v1064, %v1065
      %v1067 = vrot.slane %v1066, 1
      %v1068 = vadd.f32 %v1066, %v1067
      %v1069 = vadd.f32 %v969, %v971
      %v1070 = vadd.f32 %v1069, %v973
      %v1071 = vadd.f32 %v1070, %v975
      %v1072 = vadd.f32 %v1071, %v977
      %v1073 = vadd.f32 %v1072, %v979
      %v1074 = vadd.f32 %v1073, %v981
      %v1075 = vadd.f32 %v1074, %v983
      %v1076 = vadd.f32 %v1075, %v985
      %v1077 = vadd.f32 %v1076, %v987
      %v1078 = vadd.f32 %v1077, %v989
      %v1079 = vadd.f32 %v1078, %v991
      %v1080 = vadd.f32 %v1079, %v993
      %v1081 = vadd.f32 %v1080, %v995
      %v1082 = vadd.f32 %v1081, %v997
      %v1083 = vadd.f32 %v1082, %v999
      %v1084 = vadd.f32 %v1083, %v1001
      %v1085 = vadd.f32 %v1084, %v1003
      %v1086 = vadd.f32 %v1085, %v1005
      %v1087 = vadd.f32 %v1086, %v1007
      %v1088 = vadd.f32 %v1087, %v1009
      %v1089 = vadd.f32 %v1088, %v1011
      %v1090 = vadd.f32 %v1089, %v1013
      %v1091 = vadd.f32 %v1090, %v1015
      %v1092 = vadd.f32 %v1091, %v1017
      %v1093 = vadd.f32 %v1092, %v1019
      %v1094 = vadd.f32 %v1093, %v1021
      %v1095 = vadd.f32 %v1094, %v1023
      %v1096 = vadd.f32 %v1095, %v1025
      %v1097 = vadd.f32 %v1096, %v1027
      %v1098 = vadd.f32 %v1097, %v1029
      %v1099 = vadd.f32 %v1098, %v1031
      %v1100 = vrot.slane %v1099, 4
      %v1101 = vadd.f32 %v1099, %v1100
      %v1102 = vrot.slane %v1101, 2
      %v1103 = vadd.f32 %v1101, %v1102
      %v1104 = vrot.slane %v1103, 1
      %v1105 = vadd.f32 %v1103, %v1104
      %v1108 = vcombine.low %v1068, %v1105
      %v1110 = vunpack.c.l.s4 1966171168
      %v1111 = vunpack.c.0.s8 %v1110
      %v1112 = vlaneseq
      %v1113 = vshrl.u32 %v1112, 7
      %v1114 = vsub.s32 %v1111, %v1113
      %v1115 = vrot.slane %v1108, %v1114
      %v1117 = vunpack.c.l.s4 1966171168
      %v1118 = vunpack.c.0.s8 %v1117
      %v1119 = vlaneseq
      %v1120 = vshrl.u32 %v1119, 7
      %v1121 = vsub.s32 %v1118, %v1120
      %v1122 = vrot.slane %v1115, %v1121
      %1124 = vst.msk [vmem:[%s279] sm:$0x3] %vm966, %v1122
      %s1125 = smul.u32 32, %s21
      %p1126 = scmp.lt.s32.totalorder %s20, 1
      %s1127 = scalar_select %p1126, %s20, 1
      %p1128 = scmp.lt.s32.totalorder %s1125, 31
      %s1129 = scalar_select %p1128, %s1125, 31
      %s1130 = smul.addr %s1129, 2
      %s1131 = smul.addr %s1127, 64
      %s1132 = sadd.s32 %s1130, %s1131
      %s1133 = smul.addr %s1132, 4
      %s1134 = scalar_lea.vmem %s2, %s1133
      %p1135 = scmp.lt.s32.totalorder %s20, 1
      %s1136 = scalar_select %p1135, %s20, 1
      %p1137 = scmp.lt.s32.totalorder %s21, 0
      %s1138 = scalar_select %p1137, %s21, 0
      %s1139 = smul.addr %s1138, 2
      %s1140 = smul.addr %s1136, 2
      %s1141 = sadd.s32 %s1139, %s1140
      %s1142 = scalar_lea.vmem %s3, %s1141
      %p1143 = scmp.lt.s32.totalorder %s20, 1
      %s1144 = scalar_select %p1143, %s20, 1
      %p1145 = scmp.lt.s32.totalorder %s21, 0
      %s1146 = scalar_select %p1145, %s21, 0
      %s1147 = smul.addr %s1146, 2
      %s1148 = smul.addr %s1144, 2
      %s1149 = sadd.s32 %s1147, %s1148
      %s1150 = scalar_lea.vmem %s4, %s1149
      // Predicated region
      $region29: #{up_conv_forward.1} parent=27 // pred_check
        %p1151 = pneg %p97
      $region30: #{up_conv_forward.1} parent=27 // pred_check_branch
        %1153 = sbr.rel (%p1151) target = $region32
      $region31: #{up_conv_forward.1} parent=27 // pred_region
        %s1154 = smul.u32 32, %s21
      $region32: #{up_conv_forward.1} parent=27 // pred_fallthru
        _
      // Predicated region
      $region33: #{up_conv_forward.1} parent=27 // pred_check
        %p1155 = pneg %p125
      $region34: #{up_conv_forward.1} parent=27 // pred_check_branch
        %1157 = sbr.rel (%p1155) target = $region36
      $region35: #{up_conv_forward.1} parent=27 // pred_region
        _
      $region36: #{up_conv_forward.1} parent=27 // pred_fallthru
        _
      // Predicated region
      $region37: #{up_conv_forward.1} parent=27 // pred_check
        %p1158 = pneg %p153
      $region38: #{up_conv_forward.1} parent=27 // pred_check_branch
        %1160 = sbr.rel (%p1158) target = $region40
      $region39: #{up_conv_forward.1} parent=27 // pred_region
        _
      $region40: #{up_conv_forward.1} parent=27 // pred_fallthru
        _
    $region28: #{up_conv_forward.1} parent=5 // pred_fallthru
      _
    %p1161 = scmp.le.s32.totalorder 2, %s11
    // Predicated region
    $region41: #{up_conv_forward.1} parent=5 // pred_check
      %p1162 = pneg %p1161
    $region42: #{up_conv_forward.1} parent=5 // pred_check_branch
      %1164 = sbr.rel (%p1162) target = $region44
    $region43: #{up_conv_forward.1} parent=5 // pred_region
      %s1165 = ssub.s32 %s11, 2
      // Predicated region
      $region45: #{up_conv_forward.1} parent=43 // pred_check
        %p1166 = pneg %p103
      $region46: #{up_conv_forward.1} parent=43 // pred_check_branch
        %1168 = sbr.rel (%p1166) target = $region48
      $region47: #{up_conv_forward.1} parent=43 // pred_region
        %s1169 = smul.u32 32, %s23
        %p1170 = scmp.lt.s32.totalorder %s22, 1
        %s1171 = scalar_select %p1170, %s22, 1
        %p1172 = scmp.lt.s32.totalorder %s1169, 31
        %s1173 = scalar_select %p1172, %s1169, 31
        %s1174 = smul.addr %s1173, 2
        %s1175 = smul.addr %s1171, 64
        %s1176 = sadd.s32 %s1174, %s1175
        %s1177 = smul.addr %s1176, 4
        %s1178 = scalar_lea.vmem %s2, %s1177
      $region48: #{up_conv_forward.1} parent=43 // pred_fallthru
        _
      // Predicated region
      $region49: #{up_conv_forward.1} parent=43 // pred_check
        %p1179 = pneg %p131
      $region50: #{up_conv_forward.1} parent=43 // pred_check_branch
        %1181 = sbr.rel (%p1179) target = $region52
      $region51: #{up_conv_forward.1} parent=43 // pred_region
        %p1182 = scmp.lt.s32.totalorder %s22, 1
        %s1183 = scalar_select %p1182, %s22, 1
        %p1184 = scmp.lt.s32.totalorder %s23, 0
        %s1185 = scalar_select %p1184, %s23, 0
        %s1186 = smul.addr %s1185, 2
        %s1187 = smul.addr %s1183, 2
        %s1188 = sadd.s32 %s1186, %s1187
        %s1189 = scalar_lea.vmem %s3, %s1188
      $region52: #{up_conv_forward.1} parent=43 // pred_fallthru
        _
      // Predicated region
      $region53: #{up_conv_forward.1} parent=43 // pred_check
        %p1190 = pneg %p159
      $region54: #{up_conv_forward.1} parent=43 // pred_check_branch
        %1192 = sbr.rel (%p1190) target = $region56
      $region55: #{up_conv_forward.1} parent=43 // pred_region
        %p1193 = scmp.lt.s32.totalorder %s22, 1
        %s1194 = scalar_select %p1193, %s22, 1
        %p1195 = scmp.lt.s32.totalorder %s23, 0
        %s1196 = scalar_select %p1195, %s23, 0
        %s1197 = smul.addr %s1196, 2
        %s1198 = smul.addr %s1194, 2
        %s1199 = sadd.s32 %s1197, %s1198
        %s1200 = scalar_lea.vmem %s4, %s1199
      $region56: #{up_conv_forward.1} parent=43 // pred_fallthru
        _
    $region44: #{up_conv_forward.1} parent=5 // pred_fallthru
      _
  $region6: #{up_conv_forward.1} parent=0 // loop_footer
    %s15 = sadd.s32 1, %s11
  $region7: #{up_conv_forward.1} parent=0 // loop_footer_branch
    %10 = sbr.rel target = $region3
  $region8: #{up_conv_forward.1} parent=0 // loop_exit
    _

</llo_original>
